<compile_context>
chip_gen: v6e
topology: v6e:2x2x1
jax: 0.10.0
libtpu: 0.0.40
codegen_flags: <defaults>
</compile_context>

<pallas_src>
import jax
import jax.numpy as jnp
from jax.experimental import pallas as pl
from jax.experimental.pallas import tpu as pltpu


def _pick_lane_tile(hw: int, cap: int = 8192) -> int:
    """Largest multiple-of-128 divisor of hw that is <= cap (else hw itself)."""
    if hw <= cap or hw % 128 != 0:
        return hw
    best, t = 128, 128
    while t <= cap:
        if hw % t == 0:
            best = t
        t += 128
    return best


def _make_shuffle_kernel(perm):
    perm = tuple(int(p) for p in perm)

    def kernel(x_ref, o_ref):
        # x_ref / o_ref: (C, T) with the spatial axis T on the 128-lane axis.
        x = x_ref[...]
        # Channel permutation = static sublane selects (cheap XLU), then one
        # full-width lane-dense store of the whole tile.
        o_ref[...] = jnp.concatenate([x[i:i + 1, :] for i in perm], axis=0)

    return kernel


def channel_shuffle(x_nchw, groups: int):
    B, C, H, W = x_nchw.shape
    assert C % groups == 0, (C, groups)
    cpg = C // groups
    # output channel o = cg*G + g  <-  input channel g*cpg + cg
    perm = tuple((o % groups) * cpg + (o // groups) for o in range(C))

    HW = H * W
    T = _pick_lane_tile(HW)
    x2 = x_nchw.reshape(B, C, HW)          # free reshape; lane-dense last dim

    y2 = pl.pallas_call(
        _make_shuffle_kernel(perm),
        out_shape=jax.ShapeDtypeStruct((B, C, HW), x2.dtype),
        grid=(B, HW // T),
        in_specs=[pl.BlockSpec((None, C, T), lambda b, t: (b, 0, t))],
        out_specs=pl.BlockSpec((None, C, T), lambda b, t: (b, 0, t)),
        compiler_params=pltpu.CompilerParams(
            dimension_semantics=("parallel", "parallel")),
    )(x2)
    return y2.reshape(B, C, H, W)


def _channel_shuffle_ref(x, groups):
    # Pure-JAX reference mirroring the PyTorch forward exactly.
    B, C, H, W = x.shape
    return (x.reshape(B, groups, C // groups, H, W)
             .transpose(0, 2, 1, 3, 4)
             .reshape(B, C, H, W))


if __name__ == "__main__":
    key = jax.random.PRNGKey(0)
    B, C, H, W, groups = 2, 4, 16, 16, 2
    x = jax.random.normal(key, (B, C, H, W), dtype=jnp.float32)

    out = jax.jit(lambda xx: channel_shuffle(xx, groups))(x)
    out = jax.block_until_ready(out)

    ref = _channel_shuffle_ref(x, groups)
    assert out.shape == (B, C, H, W), out.shape
    assert bool(jnp.all(out == ref)), "channel shuffle mismatch vs reference"
    print("KERNEL_OK")
</pallas_src>

<mosaic_0001>
module attributes {stable_mosaic.version = 11 : i64} {
  func.func @kernel(%arg0: i32, %arg1: i32, %arg2: memref<1x4x256xf32, #tpu.memory_space<vmem>>, %arg3: memref<1x4x256xf32, #tpu.memory_space<vmem>>) attributes {dimension_semantics = [#tpu.dimension_semantics<parallel>, #tpu.dimension_semantics<parallel>], iteration_bounds = array<i64: 2, 1>, scalar_prefetch = 0 : i64, scratch_operands = 0 : i64, tpu.core_type = #tpu.core_type<tc>, window_params = [{transform_indices = @transform_0, window_bounds = array<i64: 1, 4, 256>}, {transform_indices = @transform_1, window_bounds = array<i64: 1, 4, 256>}]} {
    %c0 = arith.constant 0 : index
    %c0_0 = arith.constant 0 : index
    %c0_1 = arith.constant 0 : index
    %0 = vector.load %arg2[%c0, %c0_0, %c0_1] : memref<1x4x256xf32, #tpu.memory_space<vmem>>, vector<1x4x256xf32>
    %1 = vector.shape_cast %0 : vector<1x4x256xf32> to vector<4x256xf32>
    %2 = vector.extract_strided_slice %1 {offsets = [0, 0], sizes = [1, 256], strides = [1, 1]} : vector<4x256xf32> to vector<1x256xf32>
    %3 = vector.extract_strided_slice %1 {offsets = [2, 0], sizes = [1, 256], strides = [1, 1]} : vector<4x256xf32> to vector<1x256xf32>
    %4 = vector.extract_strided_slice %1 {offsets = [1, 0], sizes = [1, 256], strides = [1, 1]} : vector<4x256xf32> to vector<1x256xf32>
    %5 = vector.extract_strided_slice %1 {offsets = [3, 0], sizes = [1, 256], strides = [1, 1]} : vector<4x256xf32> to vector<1x256xf32>
    %6 = tpu.concatenate %2, %3, %4, %5 in 0 : vector<1x256xf32>, vector<1x256xf32>, vector<1x256xf32>, vector<1x256xf32> -> vector<4x256xf32>
    %c0_2 = arith.constant 0 : index
    %c0_3 = arith.constant 0 : index
    %c0_4 = arith.constant 0 : index
    %7 = vector.load %arg3[%c0_2, %c0_3, %c0_4] : memref<1x4x256xf32, #tpu.memory_space<vmem>>, vector<1x4x256xf32>
    %8 = vector.shape_cast %7 : vector<1x4x256xf32> to vector<4x256xf32>
    %9 = vector.shape_cast %6 : vector<4x256xf32> to vector<1x4x256xf32>
    tpu.vector_store %arg3[%c0_2, %c0_3, %c0_4], %9 {strides = array<i32>} : memref<1x4x256xf32, #tpu.memory_space<vmem>>, vector<1x4x256xf32>,
    return
  }
  func.func @transform_0(%arg0: i32, %arg1: i32) -> (i32, i32, i32) {
    %c0_i32 = arith.constant 0 : i32
    %c0_i32_0 = arith.constant 0 : i32
    return %arg0, %c0_i32, %arg1 : i32, i32, i32
  }
  func.func @transform_1(%arg0: i32, %arg1: i32) -> (i32, i32, i32) {
    %c0_i32 = arith.constant 0 : i32
    %c0_i32_0 = arith.constant 0 : i32
    return %arg0, %c0_i32, %arg1 : i32, i32, i32
  }
}

</mosaic_0001>

<llo_original>
// kernel: _lambda_.1
$region0: #{_lambda_.1}
  #allocation0 [shape = 'u32[]', space=smem, size = 0x4, offset = 0x4, fixed_abs, tag = 'smem constant byte address 0x4 - core index']
  #allocation1 [shape = 'u32[144,128]{1,0:T(1,128)}', space=vmem, size = 0x12000, scoped, tag = 'internal scratch']
  %s0 = inlined_call_operand.vmem [shape: f32[2,4,256], index: 0, kind: input, shape index: {}]
  %s1 = inlined_call_operand.vmem [shape: f32[2,4,256], index: 1, kind: output, shape index: {}]
  %s2 = sld [smem:[#allocation0]]
  $region37: #{_lambda_.1} parent=0
    _
  %s4 = ssub.s32 1, %s2
  %s5 = scalar_select 0, %s4, %s2
  loop: start=0, step=1, limit=4
  $region2: #{_lambda_.1} parent=0 // loop_pre_header
    _
  $region3: #{_lambda_.1} parent=0 // loop_header
    %s7 = sphi 0, %s11
    %p8 = scmp.ge.s32.totalorder %s7, 4
    %s14 = sphi 0, %s26
    %s15 = sphi 0, %s22
    %s16 = sphi 0, %s14
    %s17 = sphi 0, %s15
    %s18 = sphi 0, %s16
    %s19 = sphi 0, %s17
    %s31 = sphi 0, %s33
    %s34 = sphi 0, %s31
    %s35 = sphi 0, %s34
    %s51 = sphi 0, %s35
    %s59 = sphi 0, %s61
    %s62 = sphi 0, %s59
    %s63 = sphi 0, %s62
    %s79 = sphi 0, %s63
  $region4: #{_lambda_.1} parent=0 // loop_header_branch
    %10 = sbr.rel (%p8) target = $region8
  $region5: #{_lambda_.1} parent=0 // loop_body
    %s12 = ssub.s32 %s7, 1
    %s13 = ssub.s32 %s7, 2
    %s20 = sadd.s32 1, %s15
    %p21 = scmp.ge.s32.totalorder %s20, 1
    %s22 = scalar_select %p21, 0, %s20
    %s23 = sadd.s32 1, %s14
    %s24 = scalar_select %p21, %s23, %s14
    %p25 = scmp.ge.s32.totalorder %s24, 2
    %s26 = scalar_select %p25, 0, %s24
    %s27 = ssub.s32 %s14, %s26
    %s28 = ssub.s32 %s15, %s22
    %s29 = sor.u32 %s27, %s28
    %p30 = scmp.eq.s32.totalorder %s29, 0
    %s32 = sadd.s32 %s31, 1
    %s33 = scalar_select %p30, %s31, %s32
    %p36 = pneg %p30
    %p37 = scmp.eq.s32.totalorder %s7, 1
    %p38 = por %p36, %p37
    %p39 = scmp.ne.s32.totalorder %s31, %s34
    %p40 = scmp.eq.s32.totalorder %s7, 0
    %p41 = por %p39, %p40
    %p42 = scmp.ne.s32.totalorder %s31, %s34
    %p43 = scmp.eq.s32.totalorder %s12, 1
    %p44 = por %p42, %p43
    %p45 = scmp.ne.s32.totalorder %s34, %s35
    %p46 = scmp.eq.s32.totalorder %s12, 0
    %p47 = por %p45, %p46
    %p48 = scmp.ne.s32.totalorder %s34, %s35
    %p49 = scmp.eq.s32.totalorder %s13, 1
    %p50 = por %p48, %p49
    %p52 = scmp.ne.s32.totalorder %s35, %s51
    %p53 = scmp.eq.s32.totalorder %s13, 0
    %p54 = por %p52, %p53
    %s55 = ssub.s32 %s14, %s26
    %s56 = ssub.s32 %s15, %s22
    %s57 = sor.u32 %s55, %s56
    %p58 = scmp.eq.s32.totalorder %s57, 0
    %s60 = sadd.s32 %s59, 1
    %s61 = scalar_select %p58, %s59, %s60
    %p64 = pneg %p58
    %p65 = scmp.eq.s32.totalorder %s7, 1
    %p66 = por %p64, %p65
    %p67 = scmp.ne.s32.totalorder %s59, %s62
    %p68 = scmp.eq.s32.totalorder %s7, 0
    %p69 = por %p67, %p68
    %p70 = scmp.ne.s32.totalorder %s59, %s62
    %p71 = scmp.eq.s32.totalorder %s12, 1
    %p72 = por %p70, %p71
    %p73 = scmp.ne.s32.totalorder %s62, %s63
    %p74 = scmp.eq.s32.totalorder %s12, 0
    %p75 = por %p73, %p74
    %p76 = scmp.ne.s32.totalorder %s62, %s63
    %p77 = scmp.eq.s32.totalorder %s13, 1
    %p78 = por %p76, %p77
    %p80 = scmp.ne.s32.totalorder %s63, %s79
    %p81 = scmp.eq.s32.totalorder %s13, 0
    %p82 = por %p80, %p81
    %p83 = scmp.le.s32.totalorder 1, %s7
    %p84 = scmp.lt.s32.totalorder %s7, 3
    %p85 = pnand %p83, %p84
    %p86 = pneg %p85
    // Predicated region
    $region9: #{_lambda_.1} parent=5 // pred_check
      _
    $region10: #{_lambda_.1} parent=5 // pred_check_branch
      %88 = sbr.rel (%p85) target = $region12
    $region11: #{_lambda_.1} parent=5 // pred_region
      %s89 = ssub.s32 %s7, 1
    $region12: #{_lambda_.1} parent=5 // pred_fallthru
      _
    %p90 = scmp.lt.s32.totalorder %s7, 2
    // Predicated region
    $region13: #{_lambda_.1} parent=5 // pred_check
      %p91 = pneg %p90
    $region14: #{_lambda_.1} parent=5 // pred_check_branch
      %93 = sbr.rel (%p91) target = $region16
    $region15: #{_lambda_.1} parent=5 // pred_region
      // Predicated region
      $region17: #{_lambda_.1} parent=15 // pred_check
        %p94 = pneg %p41
      $region18: #{_lambda_.1} parent=15 // pred_check_branch
        %96 = sbr.rel (%p94) target = $region20
      $region19: #{_lambda_.1} parent=15 // pred_region
        %s97 = smul.u32 2, %s15
        %p98 = scmp.lt.s32.totalorder %s14, 1
        %s99 = scalar_select %p98, %s14, 1
        %p100 = scmp.lt.s32.totalorder %s97, 1
        %s101 = scalar_select %p100, %s97, 1
        %s102 = smul.addr %s99, 2
        %s103 = sadd.s32 %s101, %s102
        %s104 = smul.addr %s103, 4
        %s105 = scalar_lea.vmem %s0, %s104
        %s106 = smul.u32 2, %s15
      $region20: #{_lambda_.1} parent=15 // pred_fallthru
        _
    $region16: #{_lambda_.1} parent=5 // pred_fallthru
      _
    %p107 = scmp.le.s32.totalorder 1, %s7
    %p108 = scmp.lt.s32.totalorder %s7, 3
    %p109 = pnand %p107, %p108
    %p110 = pneg %p109
    // Predicated region
    $region21: #{_lambda_.1} parent=5 // pred_check
      _
    $region22: #{_lambda_.1} parent=5 // pred_check_branch
      %112 = sbr.rel (%p109) target = $region24
    $region23: #{_lambda_.1} parent=5 // pred_region
      %s113 = ssub.s32 %s7, 1
      %s114 = smul.u32 2, %s17
      %p115 = scmp.lt.s32.totalorder %s16, 1
      %s116 = scalar_select %p115, %s16, 1
      %p117 = scmp.lt.s32.totalorder %s114, 1
      %s118 = scalar_select %p117, %s114, 1
      %s119 = smul.addr %s116, 2
      %s120 = sadd.s32 %s118, %s119
      %s121 = smul.addr %s120, 4
      %s122 = scalar_lea.vmem %s0, %s121
      %p123 = pneg %p47
      %p124 = pneg %p44
      %p125 = pneg %p75
      %p126 = pneg %p72
      %s127 = smul.u32 2, %s17
      %p128 = scmp.lt.s32.totalorder %s16, 1
      %s129 = scalar_select %p128, %s16, 1
      %p130 = scmp.lt.s32.totalorder %s127, 1
      %s131 = scalar_select %p130, %s127, 1
      %s132 = smul.addr %s129, 2
      %s133 = sadd.s32 %s131, %s132
      %s134 = smul.addr %s133, 4
      %s135 = scalar_lea.vmem %s1, %s134
      %s136 = smul.u32 2, %s17
      %p137 = scmp.lt.s32.totalorder %s16, 1
      %s138 = scalar_select %p137, %s16, 1
      %p139 = scmp.lt.s32.totalorder %s136, 1
      %s140 = scalar_select %p139, %s136, 1
      %s141 = smul.addr %s138, 2
      %s142 = sadd.s32 %s140, %s141
      %s143 = smul.addr %s142, 4
      %s144 = scalar_lea.vmem %s0, %s143
      %s145 = smul.u32 2, %s17
      %s146 = smul.u32 2, %s17
      %p147 = scmp.lt.s32.totalorder %s16, 1
      %s148 = scalar_select %p147, %s16, 1
      %p149 = scmp.lt.s32.totalorder %s146, 1
      %s150 = scalar_select %p149, %s146, 1
      %s151 = smul.addr %s148, 2
      %s152 = sadd.s32 %s150, %s151
      %s153 = smul.addr %s152, 4
      %s154 = scalar_lea.vmem %s1, %s153
      %s155 = smul.u32 2, %s17
      %v156 = vld [vmem:[%s144] sm:$0xff]
      %v158 = vlaneseq
      %v159 = vshrl.u32 %v158, 7
      %v160 = vsub.s32 0, %v159
      %v161 = vrot.slane %v156, %v160
      %v162 = vlaneseq
      %v163 = vshrl.u32 %v162, 7
      %v164 = vsub.s32 4, %v163
      %v165 = vrot.slane %v156, %v164
      %v168 = vlaneseq
      %v169 = vshrl.u32 %v168, 7
      %v170 = vsub.s32 2, %v169
      %v171 = vrot.slane %v156, %v170
      %v172 = vlaneseq
      %v173 = vshrl.u32 %v172, 7
      %v174 = vsub.s32 6, %v173
      %v175 = vrot.slane %v156, %v174
      %v178 = vlaneseq
      %v179 = vshrl.u32 %v178, 7
      %v180 = vsub.s32 1, %v179
      %v181 = vrot.slane %v156, %v180
      %v182 = vlaneseq
      %v183 = vshrl.u32 %v182, 7
      %v184 = vsub.s32 5, %v183
      %v185 = vrot.slane %v156, %v184
      %v188 = vlaneseq
      %v189 = vshrl.u32 %v188, 7
      %v190 = vsub.s32 3, %v189
      %v191 = vrot.slane %v156, %v190
      %v192 = vlaneseq
      %v193 = vshrl.u32 %v192, 7
      %v194 = vsub.s32 7, %v193
      %v195 = vrot.slane %v156, %v194
      %vm198 = vcmask 1040384
      %v199 = vsel %vm198, %v161, %v171
      %v200 = vsel %vm198, %v165, %v175
      %vm201 = vcmask 1041408
      %v202 = vsel %vm201, %v199, %v181
      %v203 = vsel %vm201, %v200, %v185
      %vm204 = vcmask 1042432
      %v205 = vsel %vm204, %v202, %v191
      %v206 = vsel %vm204, %v203, %v195
      %v209 = vcombine.low %v205, %v206
      %211 = vst [vmem:[%s154] sm:$0xff] %v209
      %s212 = smul.u32 2, %s17
      %p213 = scmp.lt.s32.totalorder %s16, 1
      %s214 = scalar_select %p213, %s16, 1
      %p215 = scmp.lt.s32.totalorder %s212, 1
      %s216 = scalar_select %p215, %s212, 1
      %s217 = smul.addr %s214, 2
      %s218 = sadd.s32 %s216, %s217
      %s219 = smul.addr %s218, 4
      %s220 = scalar_lea.vmem %s1, %s219
      // Predicated region
      $region25: #{_lambda_.1} parent=23 // pred_check
        %p221 = pneg %p72
      $region26: #{_lambda_.1} parent=23 // pred_check_branch
        %223 = sbr.rel (%p221) target = $region28
      $region27: #{_lambda_.1} parent=23 // pred_region
        %s224 = smul.u32 2, %s17
      $region28: #{_lambda_.1} parent=23 // pred_fallthru
        _
    $region24: #{_lambda_.1} parent=5 // pred_fallthru
      _
    %p225 = scmp.le.s32.totalorder 2, %s7
    // Predicated region
    $region29: #{_lambda_.1} parent=5 // pred_check
      %p226 = pneg %p225
    $region30: #{_lambda_.1} parent=5 // pred_check_branch
      %228 = sbr.rel (%p226) target = $region32
    $region31: #{_lambda_.1} parent=5 // pred_region
      %s229 = ssub.s32 %s7, 2
      // Predicated region
      $region33: #{_lambda_.1} parent=31 // pred_check
        %p230 = pneg %p78
      $region34: #{_lambda_.1} parent=31 // pred_check_branch
        %232 = sbr.rel (%p230) target = $region36
      $region35: #{_lambda_.1} parent=31 // pred_region
        %s233 = smul.u32 2, %s19
        %p234 = scmp.lt.s32.totalorder %s18, 1
        %s235 = scalar_select %p234, %s18, 1
        %p236 = scmp.lt.s32.totalorder %s233, 1
        %s237 = scalar_select %p236, %s233, 1
        %s238 = smul.addr %s235, 2
        %s239 = sadd.s32 %s237, %s238
        %s240 = smul.addr %s239, 4
        %s241 = scalar_lea.vmem %s1, %s240
      $region36: #{_lambda_.1} parent=31 // pred_fallthru
        _
    $region32: #{_lambda_.1} parent=5 // pred_fallthru
      _
  $region6: #{_lambda_.1} parent=0 // loop_footer
    %s11 = sadd.s32 1, %s7
  $region7: #{_lambda_.1} parent=0 // loop_footer_branch
    %6 = sbr.rel target = $region3
  $region8: #{_lambda_.1} parent=0 // loop_exit
    _

</llo_original>
